<compile_context>
chip_gen: v7x
topology: tpu7x:2x2x1
jax: 0.10.0
libtpu: 0.0.40
codegen_flags: <defaults>
</compile_context>

<pallas_src>
import numpy as np
import jax
import jax.numpy as jnp
from jax.experimental import pallas as pl
from jax.experimental.pallas import tpu as pltpu

_LANES = 128
_SUBLANES = 8
# packed channel order
_C_TX, _C_TY, _C_TWL, _C_THL, _C_TOBJ, _C_OBJ, _C_NOOBJ, _C_GGX, _C_GGY, _C_GGW, _C_GGH = range(11)
_NUM_CHANNELS = 11


def _yolov2_loss_kernel(packed_ref, out_ref):
    """packed_ref: (11, R, 128) f32 VMEM.  out_ref: (4,) f32 SMEM (raw sums)."""
    tx = packed_ref[_C_TX]
    ty = packed_ref[_C_TY]
    twl = packed_ref[_C_TWL]      # tw + ln(anchor_w)
    thl = packed_ref[_C_THL]      # th + ln(anchor_h)
    tobj = packed_ref[_C_TOBJ]
    obj = packed_ref[_C_OBJ]      # 1.0 at matched cells, 0 elsewhere / padding
    noobj = packed_ref[_C_NOOBJ]  # 1 - obj on valid cells, 0 on padding
    ggx = packed_ref[_C_GGX]
    ggy = packed_ref[_C_GGY]
    ggw = packed_ref[_C_GGW]
    ggh = packed_ref[_C_GGH]

    # decode predictions (dense; off-mask cells are killed by obj/noobj masks,
    # matching the reference which only fills matched cells)
    pbx = jax.nn.sigmoid(tx)
    pby = jax.nn.sigmoid(ty)
    pbw = jnp.exp(twl)            # == exp(tw) * anchor_w (folded on host)
    pbh = jnp.exp(thl)            # == exp(th) * anchor_h
    obj_conf = jax.nn.sigmoid(tobj)

    # IoU between GT box and predicted box in grid-cell units.  The reference
    # adds the same (gi, gj) cell offset to both box centres; IoU is
    # translation invariant so the offsets cancel and are omitted here.
    iw = jnp.maximum(
        0.0,
        jnp.minimum(ggx + ggw * 0.5, pbx + pbw * 0.5)
        - jnp.maximum(ggx - ggw * 0.5, pbx - pbw * 0.5))
    ih = jnp.maximum(
        0.0,
        jnp.minimum(ggy + ggh * 0.5, pby + pbh * 0.5)
        - jnp.maximum(ggy - ggh * 0.5, pby - pbh * 0.5))
    inter = iw * ih
    union = ggw * ggh + pbw * pbh - inter
    pos = union > 0.0
    # exact division kept (not approx reciprocal) to preserve reference-level accuracy
    iou = jnp.where(pos, inter / jnp.where(pos, union, 1.0), 0.0)

    # raw (un-weighted) loss parts; lambda scaling happens in the wrapper
    coord_offset = jnp.sum(obj * ((pbx - ggx) ** 2 + (pby - ggy) ** 2))
    coord_scale = jnp.sum(
        obj * ((jnp.sqrt(pbw + 1e-6) - jnp.sqrt(ggw + 1e-6)) ** 2
               + (jnp.sqrt(pbh + 1e-6) - jnp.sqrt(ggh + 1e-6)) ** 2))
    obj_loss = jnp.sum(obj * (iou - obj_conf) ** 2)
    noobj_loss = jnp.sum(noobj * obj_conf * obj_conf)

    out_ref[0] = coord_offset
    out_ref[1] = coord_scale
    out_ref[2] = obj_loss
    out_ref[3] = noobj_loss


def _run_loss_kernel(packed):
    """packed: (11, R, 128) f32.  Returns (4,) raw loss sums."""
    _, r, lanes = packed.shape
    n_cells = r * lanes
    vmem_bytes = int(min(64 << 20, max(16 << 20, 2 * packed.size * 4 + (2 << 20))))
    return pl.pallas_call(
        _yolov2_loss_kernel,
        out_shape=jax.ShapeDtypeStruct((4,), jnp.float32),
        in_specs=[pl.BlockSpec(memory_space=pltpu.MemorySpace.VMEM)],
        out_specs=pl.BlockSpec(memory_space=pltpu.MemorySpace.SMEM),
        cost_estimate=pl.CostEstimate(
            flops=int(45 * n_cells),
            transcendentals=int(9 * n_cells),
            bytes_accessed=int(packed.size * 4 + 16)),
        compiler_params=pltpu.CompilerParams(vmem_limit_bytes=vmem_bytes),
    )(packed)


class Yolov2LossPallas:
    def __init__(self, num_classes, anchors, lambda_coord=5.0, lambda_noobj=0.5):
        self.num_classes = num_classes
        self.anchors = anchors
        self.lambda_coord = lambda_coord
        self.lambda_noobj = lambda_noobj
        self.count = 0

    def forward(self, predictions, targets, imgs=None):
        B, sh, sw, pred_dim = predictions.shape
        A = len(self.anchors)
        C = self.num_classes
        expected = A * (5 + C)
        assert pred_dim == expected, f"Expected {expected}, got {pred_dim}"

        # channel-last extraction, no (0,3,1,2,4) permute: (B, sh, sw, A, 5+C)
        p = predictions.reshape(B, sh, sw, A, 5 + C).astype(jnp.float32)
        tx = p[..., 0]
        ty = p[..., 1]
        tw = p[..., 2]
        th = p[..., 3]
        tobj = p[..., 4]
        # class probs (p[..., 5:]) unused: class loss is commented out in the reference.

        anchors_arr = np.asarray(self.anchors, np.float32)     # (A, 2)
        log_aw = jnp.asarray(np.log(anchors_arr[:, 0]))        # (A,)
        log_ah = jnp.asarray(np.log(anchors_arr[:, 1]))
        tw_adj = tw + log_aw   # exp(tw_adj) == exp(tw) * anchor_w
        th_adj = th + log_ah

        # ---------- host-side glue: GT -> (anchor, cell) assignment ----------
        # Compact per-GT data only; dense maps are built on-device by scatter.
        stride_b, stride_h, stride_w = sh * sw * A, sw * A, A
        assign = {}  # flat cell index -> (ggx, ggy, ggw, ggh); last GT wins (as in ref loop)
        for b in range(B):
            for gt in np.asarray(targets[b]):
                gx, gy, gw, gh, _gt_cls = [float(v) for v in gt]
                w1, h1 = gw * sw, gh * sh
                best_a, best_iou = 0, -1.0
                for a_idx, (aw_, ah_) in enumerate(self.anchors):
                    inter = min(w1, aw_) * min(h1, ah_)
                    union = w1 * h1 + aw_ * ah_ - inter
                    iou = inter / union if union > 0 else 0.0
                    if iou > best_iou:
                        best_iou, best_a = iou, a_idx
                gi = int(gx * sw)
                gj = int(gy * sh)
                flat = b * stride_b + gj * stride_h + gi * stride_w + best_a
                assign[flat] = (gx * sw - gi, gy * sh - gj, gw * sw, gh * sh)
        # TODO(synk): reference prints a pos_count debug line; omitted here.

        n_cells = B * sh * sw * A
        if assign:
            idx_np = np.fromiter(assign.keys(), dtype=np.int64)
            vals_np = np.asarray(list(assign.values()), np.float32)  # (G, 4)
        else:
            idx_np = np.zeros((0,), np.int64)
            vals_np = np.zeros((0, 4), np.float32)
        idx = jnp.asarray(idx_np, dtype=jnp.int32)
        vals = jnp.asarray(vals_np)

        zeros = jnp.zeros((n_cells,), jnp.float32)
        obj_mask = zeros.at[idx].set(1.0)
        noobj_mask = 1.0 - obj_mask
        ggx = zeros.at[idx].set(vals[:, 0])
        ggy = zeros.at[idx].set(vals[:, 1])
        ggw = zeros.at[idx].set(vals[:, 2])
        ggh = zeros.at[idx].set(vals[:, 3])

        # ---------------- lane-dense packing: (11, R, 128) -------------------
        n_pad = -(-n_cells // (_LANES * _SUBLANES)) * (_LANES * _SUBLANES)
        pad = n_pad - n_cells

        def prep(x):
            x = x.reshape(n_cells)
            if pad:
                x = jnp.pad(x, (0, pad))  # masks pad with 0 -> padding contributes nothing
            return x.reshape(n_pad // _LANES, _LANES)

        packed = jnp.stack([
            prep(tx), prep(ty), prep(tw_adj), prep(th_adj), prep(tobj),
            prep(obj_mask), prep(noobj_mask),
            prep(ggx), prep(ggy), prep(ggw), prep(ggh)])
        # TODO(synk): for extreme B*A*S*S (beyond real YOLO scales) add a 1-D
        # blocked grid over rows with a pl.when-initialized accumulator.

        parts = _run_loss_kernel(packed)

        # lambda application mirrors the reference module exactly
        loss_coord_offset = self.lambda_coord * parts[0]
        loss_coord_scale = self.lambda_coord * parts[1]
        loss_obj = parts[2]
        loss_no_obj = self.lambda_noobj * parts[3]
        total_loss = (self.lambda_coord * (loss_coord_offset + loss_coord_scale)
                      + loss_obj + self.lambda_noobj * loss_no_obj)
        return {
            "total": total_loss,
            "coord": loss_coord_offset + loss_coord_scale,
            "obj": loss_obj + loss_no_obj,
        }


def _reference_forward_numpy(predictions, targets, anchors, num_classes,
                             lambda_coord=5.0, lambda_noobj=0.5):
    """Faithful numpy replica of the PyTorch Yolov2Loss.forward (float64)."""
    pred = np.asarray(predictions, np.float64)
    B, sh, sw, _ = pred.shape
    A = len(anchors)
    p = pred.reshape(B, sh, sw, A, 5 + num_classes).transpose(0, 3, 1, 2, 4)
    tx, ty, tw, th, tobj = (p[..., k] for k in range(5))

    def sigmoid(z):
        return 1.0 / (1.0 + np.exp(-z))

    obj_conf = sigmoid(tobj)
    shape = (B, A, sh, sw)
    obj_mask = np.zeros(shape)
    noobj_mask = np.ones(shape)
    ggx = np.zeros(shape); ggy = np.zeros(shape)
    ggw = np.zeros(shape); ggh = np.zeros(shape)
    pbx = np.zeros(shape); pby = np.zeros(shape)
    pbw = np.zeros(shape); pbh = np.zeros(shape)
    iou_map = np.zeros(shape)

    for b in range(B):
        for gt in np.asarray(targets[b]):
            gx, gy, gw, gh, _ = [float(v) for v in gt]
            w1, h1 = gw * sw, gh * sh
            ious = []
            for (aw_, ah_) in anchors:
                inter = min(w1, aw_) * min(h1, ah_)
                union = w1 * h1 + aw_ * ah_ - inter
                ious.append(inter / union if union > 0 else 0.0)
            ba = int(np.argmax(np.asarray(ious)))
            gi, gj = int(gx * sw), int(gy * sh)
            obj_mask[b, ba, gj, gi] = 1.0
            noobj_mask[b, ba, gj, gi] = 0.0
            ggx[b, ba, gj, gi] = gx * sw - gi
            ggy[b, ba, gj, gi] = gy * sh - gj
            ggw[b, ba, gj, gi] = gw * sw
            ggh[b, ba, gj, gi] = gh * sh
            pbx[b, ba, gj, gi] = sigmoid(tx[b, ba, gj, gi])
            pby[b, ba, gj, gi] = sigmoid(ty[b, ba, gj, gi])
            pbw[b, ba, gj, gi] = np.exp(tw[b, ba, gj, gi]) * anchors[ba][0]
            pbh[b, ba, gj, gi] = np.exp(th[b, ba, gj, gi]) * anchors[ba][1]
            cx1, cy1 = ggx[b, ba, gj, gi] + gi, ggy[b, ba, gj, gi] + gj
            cx2, cy2 = pbx[b, ba, gj, gi] + gi, pby[b, ba, gj, gi] + gj
            w1c, h1c = ggw[b, ba, gj, gi], ggh[b, ba, gj, gi]
            w2c, h2c = pbw[b, ba, gj, gi], pbh[b, ba, gj, gi]
            iw = max(0.0, min(cx1 + w1c / 2, cx2 + w2c / 2) - max(cx1 - w1c / 2, cx2 - w2c / 2))
            ih = max(0.0, min(cy1 + h1c / 2, cy2 + h2c / 2) - max(cy1 - h1c / 2, cy2 - h2c / 2))
            inter = iw * ih
            union = w1c * h1c + w2c * h2c - inter
            iou_map[b, ba, gj, gi] = inter / union if union > 0 else 0.0

    lco = lambda_coord * np.sum(obj_mask * ((pbx - ggx) ** 2 + (pby - ggy) ** 2))
    lcs = lambda_coord * np.sum(
        obj_mask * ((np.sqrt(pbw + 1e-6) - np.sqrt(ggw + 1e-6)) ** 2
                    + (np.sqrt(pbh + 1e-6) - np.sqrt(ggh + 1e-6)) ** 2))
    lo = np.sum(obj_mask * (iou_map - obj_conf) ** 2)
    lno = lambda_noobj * np.sum(noobj_mask * obj_conf ** 2)
    total = lambda_coord * (lco + lcs) + lo + lambda_noobj * lno
    return {"total": total, "coord": lco + lcs, "obj": lo + lno}


if __name__ == "__main__":
    num_classes = 4
    anchors = [(1.0, 1.5), (2.0, 1.0), (3.0, 3.0), (1.5, 2.5)]
    A = len(anchors)
    B, SH, SW = 2, 8, 8
    NUM_GT = 3

    key = jax.random.PRNGKey(0)
    k_pred, k_xy, k_wh, k_cls = jax.random.split(key, 4)

    predictions = jax.random.normal(
        k_pred, (B, SH, SW, A * (5 + num_classes)), dtype=jnp.float32)

    gxy = jax.random.uniform(k_xy, (B, NUM_GT, 2), minval=0.05, maxval=0.95)
    gwh = jax.random.uniform(k_wh, (B, NUM_GT, 2), minval=0.10, maxval=0.45)
    gcls = jax.random.randint(k_cls, (B, NUM_GT, 1), 0, num_classes).astype(jnp.float32)
    targets = np.asarray(jnp.concatenate([gxy, gwh, gcls], axis=-1))  # (B, T, 5)

    loss_mod = Yolov2LossPallas(num_classes, anchors)
    losses = loss_mod.forward(predictions, targets)
    jax.block_until_ready(losses["total"])

    ref = _reference_forward_numpy(np.asarray(predictions), targets, anchors, num_classes)
    np.testing.assert_allclose(float(losses["total"]), ref["total"], rtol=1e-4, atol=1e-4)
    np.testing.assert_allclose(float(losses["coord"]), ref["coord"], rtol=1e-4, atol=1e-4)
    np.testing.assert_allclose(float(losses["obj"]), ref["obj"], rtol=1e-4, atol=1e-4)

    print("KERNEL_OK")
</pallas_src>

<mosaic_0001>
module attributes {stable_mosaic.version = 11 : i64} {
  func.func @_yolov2_loss_kernel(%arg0: memref<11x8x128xf32, #tpu.memory_space<vmem>>, %arg1: memref<4xf32, #tpu.memory_space<smem>>) attributes {dimension_semantics = [], scalar_prefetch = 0 : i64, scratch_operands = 0 : i64, tpu.core_type = #tpu.core_type<tc>} {
    %c0 = arith.constant 0 : index
    %c0_0 = arith.constant 0 : index
    %c0_1 = arith.constant 0 : index
    %0 = vector.load %arg0[%c0, %c0_0, %c0_1] : memref<11x8x128xf32, #tpu.memory_space<vmem>>, vector<1x8x128xf32>
    %1 = vector.shape_cast %0 : vector<1x8x128xf32> to vector<8x128xf32>
    %c1 = arith.constant 1 : index
    %c0_2 = arith.constant 0 : index
    %c0_3 = arith.constant 0 : index
    %2 = vector.load %arg0[%c1, %c0_2, %c0_3] : memref<11x8x128xf32, #tpu.memory_space<vmem>>, vector<1x8x128xf32>
    %3 = vector.shape_cast %2 : vector<1x8x128xf32> to vector<8x128xf32>
    %c2 = arith.constant 2 : index
    %c0_4 = arith.constant 0 : index
    %c0_5 = arith.constant 0 : index
    %4 = vector.load %arg0[%c2, %c0_4, %c0_5] : memref<11x8x128xf32, #tpu.memory_space<vmem>>, vector<1x8x128xf32>
    %5 = vector.shape_cast %4 : vector<1x8x128xf32> to vector<8x128xf32>
    %c3 = arith.constant 3 : index
    %c0_6 = arith.constant 0 : index
    %c0_7 = arith.constant 0 : index
    %6 = vector.load %arg0[%c3, %c0_6, %c0_7] : memref<11x8x128xf32, #tpu.memory_space<vmem>>, vector<1x8x128xf32>
    %7 = vector.shape_cast %6 : vector<1x8x128xf32> to vector<8x128xf32>
    %c4 = arith.constant 4 : index
    %c0_8 = arith.constant 0 : index
    %c0_9 = arith.constant 0 : index
    %8 = vector.load %arg0[%c4, %c0_8, %c0_9] : memref<11x8x128xf32, #tpu.memory_space<vmem>>, vector<1x8x128xf32>
    %9 = vector.shape_cast %8 : vector<1x8x128xf32> to vector<8x128xf32>
    %c5 = arith.constant 5 : index
    %c0_10 = arith.constant 0 : index
    %c0_11 = arith.constant 0 : index
    %10 = vector.load %arg0[%c5, %c0_10, %c0_11] : memref<11x8x128xf32, #tpu.memory_space<vmem>>, vector<1x8x128xf32>
    %11 = vector.shape_cast %10 : vector<1x8x128xf32> to vector<8x128xf32>
    %c6 = arith.constant 6 : index
    %c0_12 = arith.constant 0 : index
    %c0_13 = arith.constant 0 : index
    %12 = vector.load %arg0[%c6, %c0_12, %c0_13] : memref<11x8x128xf32, #tpu.memory_space<vmem>>, vector<1x8x128xf32>
    %13 = vector.shape_cast %12 : vector<1x8x128xf32> to vector<8x128xf32>
    %c7 = arith.constant 7 : index
    %c0_14 = arith.constant 0 : index
    %c0_15 = arith.constant 0 : index
    %14 = vector.load %arg0[%c7, %c0_14, %c0_15] : memref<11x8x128xf32, #tpu.memory_space<vmem>>, vector<1x8x128xf32>
    %15 = vector.shape_cast %14 : vector<1x8x128xf32> to vector<8x128xf32>
    %c8 = arith.constant 8 : index
    %c0_16 = arith.constant 0 : index
    %c0_17 = arith.constant 0 : index
    %16 = vector.load %arg0[%c8, %c0_16, %c0_17] : memref<11x8x128xf32, #tpu.memory_space<vmem>>, vector<1x8x128xf32>
    %17 = vector.shape_cast %16 : vector<1x8x128xf32> to vector<8x128xf32>
    %c9 = arith.constant 9 : index
    %c0_18 = arith.constant 0 : index
    %c0_19 = arith.constant 0 : index
    %18 = vector.load %arg0[%c9, %c0_18, %c0_19] : memref<11x8x128xf32, #tpu.memory_space<vmem>>, vector<1x8x128xf32>
    %19 = vector.shape_cast %18 : vector<1x8x128xf32> to vector<8x128xf32>
    %c10 = arith.constant 10 : index
    %c0_20 = arith.constant 0 : index
    %c0_21 = arith.constant 0 : index
    %20 = vector.load %arg0[%c10, %c0_20, %c0_21] : memref<11x8x128xf32, #tpu.memory_space<vmem>>, vector<1x8x128xf32>
    %21 = vector.shape_cast %20 : vector<1x8x128xf32> to vector<8x128xf32>
    %22 = arith.negf %1 : vector<8x128xf32>
    %23 = math.exp %22 : vector<8x128xf32>
    %cst = arith.constant 1.000000e+00 : f32
    %24 = vector.broadcast %cst : f32 to vector<8x128xf32>
    %25 = arith.addf %24, %23 : vector<8x128xf32>
    %26 = arith.divf %24, %25 : vector<8x128xf32>
    %27 = arith.negf %3 : vector<8x128xf32>
    %28 = math.exp %27 : vector<8x128xf32>
    %cst_22 = arith.constant 1.000000e+00 : f32
    %29 = vector.broadcast %cst_22 : f32 to vector<8x128xf32>
    %30 = arith.addf %29, %28 : vector<8x128xf32>
    %31 = arith.divf %29, %30 : vector<8x128xf32>
    %32 = math.exp %5 : vector<8x128xf32>
    %33 = math.exp %7 : vector<8x128xf32>
    %34 = arith.negf %9 : vector<8x128xf32>
    %35 = math.exp %34 : vector<8x128xf32>
    %cst_23 = arith.constant 1.000000e+00 : f32
    %36 = vector.broadcast %cst_23 : f32 to vector<8x128xf32>
    %37 = arith.addf %36, %35 : vector<8x128xf32>
    %38 = arith.divf %36, %37 : vector<8x128xf32>
    %cst_24 = arith.constant 5.000000e-01 : f32
    %39 = vector.broadcast %cst_24 : f32 to vector<8x128xf32>
    %40 = arith.mulf %19, %39 : vector<8x128xf32>
    %41 = arith.addf %15, %40 : vector<8x128xf32>
    %cst_25 = arith.constant 5.000000e-01 : f32
    %42 = vector.broadcast %cst_25 : f32 to vector<8x128xf32>
    %43 = arith.mulf %32, %42 : vector<8x128xf32>
    %44 = arith.addf %26, %43 : vector<8x128xf32>
    %45 = arith.minimumf %41, %44 : vector<8x128xf32>
    %cst_26 = arith.constant 5.000000e-01 : f32
    %46 = vector.broadcast %cst_26 : f32 to vector<8x128xf32>
    %47 = arith.mulf %19, %46 : vector<8x128xf32>
    %48 = arith.subf %15, %47 : vector<8x128xf32>
    %cst_27 = arith.constant 5.000000e-01 : f32
    %49 = vector.broadcast %cst_27 : f32 to vector<8x128xf32>
    %50 = arith.mulf %32, %49 : vector<8x128xf32>
    %51 = arith.subf %26, %50 : vector<8x128xf32>
    %52 = arith.maximumf %48, %51 : vector<8x128xf32>
    %53 = arith.subf %45, %52 : vector<8x128xf32>
    %cst_28 = arith.constant 0.000000e+00 : f32
    %54 = vector.broadcast %cst_28 : f32 to vector<8x128xf32>
    %55 = arith.maximumf %54, %53 : vector<8x128xf32>
    %cst_29 = arith.constant 5.000000e-01 : f32
    %56 = vector.broadcast %cst_29 : f32 to vector<8x128xf32>
    %57 = arith.mulf %21, %56 : vector<8x128xf32>
    %58 = arith.addf %17, %57 : vector<8x128xf32>
    %cst_30 = arith.constant 5.000000e-01 : f32
    %59 = vector.broadcast %cst_30 : f32 to vector<8x128xf32>
    %60 = arith.mulf %33, %59 : vector<8x128xf32>
    %61 = arith.addf %31, %60 : vector<8x128xf32>
    %62 = arith.minimumf %58, %61 : vector<8x128xf32>
    %cst_31 = arith.constant 5.000000e-01 : f32
    %63 = vector.broadcast %cst_31 : f32 to vector<8x128xf32>
    %64 = arith.mulf %21, %63 : vector<8x128xf32>
    %65 = arith.subf %17, %64 : vector<8x128xf32>
    %cst_32 = arith.constant 5.000000e-01 : f32
    %66 = vector.broadcast %cst_32 : f32 to vector<8x128xf32>
    %67 = arith.mulf %33, %66 : vector<8x128xf32>
    %68 = arith.subf %31, %67 : vector<8x128xf32>
    %69 = arith.maximumf %65, %68 : vector<8x128xf32>
    %70 = arith.subf %62, %69 : vector<8x128xf32>
    %cst_33 = arith.constant 0.000000e+00 : f32
    %71 = vector.broadcast %cst_33 : f32 to vector<8x128xf32>
    %72 = arith.maximumf %71, %70 : vector<8x128xf32>
    %73 = arith.mulf %55, %72 : vector<8x128xf32>
    %74 = arith.mulf %19, %21 : vector<8x128xf32>
    %75 = arith.mulf %32, %33 : vector<8x128xf32>
    %76 = arith.addf %74, %75 : vector<8x128xf32>
    %77 = arith.subf %76, %73 : vector<8x128xf32>
    %cst_34 = arith.constant 0.000000e+00 : f32
    %78 = vector.broadcast %cst_34 : f32 to vector<8x128xf32>
    %79 = arith.cmpf ogt, %77, %78 : vector<8x128xf32>
    %cst_35 = arith.constant 1.000000e+00 : f32
    %80 = vector.broadcast %cst_35 : f32 to vector<8x128xf32>
    %81 = arith.select %79, %77, %80 : vector<8x128xi1>, vector<8x128xf32>
    %82 = arith.divf %73, %81 : vector<8x128xf32>
    %cst_36 = arith.constant 0.000000e+00 : f32
    %83 = vector.broadcast %cst_36 : f32 to vector<8x128xf32>
    %84 = arith.select %79, %82, %83 : vector<8x128xi1>, vector<8x128xf32>
    %85 = arith.subf %26, %15 : vector<8x128xf32>
    %86 = arith.mulf %85, %85 : vector<8x128xf32>
    %87 = arith.subf %31, %17 : vector<8x128xf32>
    %88 = arith.mulf %87, %87 : vector<8x128xf32>
    %89 = arith.addf %86, %88 : vector<8x128xf32>
    %90 = arith.mulf %11, %89 : vector<8x128xf32>
    %91 = vector.shape_cast %90 : vector<8x128xf32> to vector<1x8x128xf32>
    %cst_37 = arith.constant dense<0.000000e+00> : vector<1xf32>
    %92 = vector.multi_reduction <add>, %91, %cst_37 [1, 2] : vector<1x8x128xf32> to vector<1xf32>
    %93 = vector.shape_cast %92 : vector<1xf32> to vector<1x1x1xf32>
    %94 = vector.extract %93[0, 0, 0] : f32 from vector<1x1x1xf32>
    %cst_38 = arith.constant 9.99999997E-7 : f32
    %95 = vector.broadcast %cst_38 : f32 to vector<8x128xf32>
    %96 = arith.addf %32, %95 : vector<8x128xf32>
    %97 = math.sqrt %96 : vector<8x128xf32>
    %cst_39 = arith.constant 9.99999997E-7 : f32
    %98 = vector.broadcast %cst_39 : f32 to vector<8x128xf32>
    %99 = arith.addf %19, %98 : vector<8x128xf32>
    %100 = math.sqrt %99 : vector<8x128xf32>
    %101 = arith.subf %97, %100 : vector<8x128xf32>
    %102 = arith.mulf %101, %101 : vector<8x128xf32>
    %cst_40 = arith.constant 9.99999997E-7 : f32
    %103 = vector.broadcast %cst_40 : f32 to vector<8x128xf32>
    %104 = arith.addf %33, %103 : vector<8x128xf32>
    %105 = math.sqrt %104 : vector<8x128xf32>
    %cst_41 = arith.constant 9.99999997E-7 : f32
    %106 = vector.broadcast %cst_41 : f32 to vector<8x128xf32>
    %107 = arith.addf %21, %106 : vector<8x128xf32>
    %108 = math.sqrt %107 : vector<8x128xf32>
    %109 = arith.subf %105, %108 : vector<8x128xf32>
    %110 = arith.mulf %109, %109 : vector<8x128xf32>
    %111 = arith.addf %102, %110 : vector<8x128xf32>
    %112 = arith.mulf %11, %111 : vector<8x128xf32>
    %113 = vector.shape_cast %112 : vector<8x128xf32> to vector<1x8x128xf32>
    %cst_42 = arith.constant dense<0.000000e+00> : vector<1xf32>
    %114 = vector.multi_reduction <add>, %113, %cst_42 [1, 2] : vector<1x8x128xf32> to vector<1xf32>
    %115 = vector.shape_cast %114 : vector<1xf32> to vector<1x1x1xf32>
    %116 = vector.extract %115[0, 0, 0] : f32 from vector<1x1x1xf32>
    %117 = arith.subf %84, %38 : vector<8x128xf32>
    %118 = arith.mulf %117, %117 : vector<8x128xf32>
    %119 = arith.mulf %11, %118 : vector<8x128xf32>
    %120 = vector.shape_cast %119 : vector<8x128xf32> to vector<1x8x128xf32>
    %cst_43 = arith.constant dense<0.000000e+00> : vector<1xf32>
    %121 = vector.multi_reduction <add>, %120, %cst_43 [1, 2] : vector<1x8x128xf32> to vector<1xf32>
    %122 = vector.shape_cast %121 : vector<1xf32> to vector<1x1x1xf32>
    %123 = vector.extract %122[0, 0, 0] : f32 from vector<1x1x1xf32>
    %124 = arith.mulf %13, %38 : vector<8x128xf32>
    %125 = arith.mulf %124, %38 : vector<8x128xf32>
    %126 = vector.shape_cast %125 : vector<8x128xf32> to vector<1x8x128xf32>
    %cst_44 = arith.constant dense<0.000000e+00> : vector<1xf32>
    %127 = vector.multi_reduction <add>, %126, %cst_44 [1, 2] : vector<1x8x128xf32> to vector<1xf32>
    %128 = vector.shape_cast %127 : vector<1xf32> to vector<1x1x1xf32>
    %129 = vector.extract %128[0, 0, 0] : f32 from vector<1x1x1xf32>
    %c0_45 = arith.constant 0 : index
    %130 = memref.load %arg1[%c0_45] : memref<4xf32, #tpu.memory_space<smem>>
    memref.store %94, %arg1[%c0_45] : memref<4xf32, #tpu.memory_space<smem>>
    %c1_46 = arith.constant 1 : index
    %131 = memref.load %arg1[%c1_46] : memref<4xf32, #tpu.memory_space<smem>>
    memref.store %116, %arg1[%c1_46] : memref<4xf32, #tpu.memory_space<smem>>
    %c2_47 = arith.constant 2 : index
    %132 = memref.load %arg1[%c2_47] : memref<4xf32, #tpu.memory_space<smem>>
    memref.store %123, %arg1[%c2_47] : memref<4xf32, #tpu.memory_space<smem>>
    %c3_48 = arith.constant 3 : index
    %133 = memref.load %arg1[%c3_48] : memref<4xf32, #tpu.memory_space<smem>>
    memref.store %129, %arg1[%c3_48] : memref<4xf32, #tpu.memory_space<smem>>
    return
  }
}

</mosaic_0001>

<llo_original>
// kernel: tpu_custom_call.1
$region0: #{tpu_custom_call.1}
  #allocation0 [shape = 'u32[]', space=smem, size = 0x4, offset = 0x4, fixed_abs, tag = 'smem constant byte address 0x4 - core index']
  #allocation1 [shape = 'u32[144,128]{1,0:T(1,128)}', space=vmem, size = 0x12000, scoped, tag = 'internal scratch']
  %s0 = inlined_call_operand.hbm [shape: f32[11,8,128], index: 0, kind: input, shape index: {}]
  %s1 = inlined_call_operand.hbm [shape: f32[4], index: 1, kind: output, shape index: {}]
  %s2 = sld [smem:[#allocation0]]
  $region18: #{tpu_custom_call.1} parent=0
    _
  %s4 = ssub.s32 1, %s2
  %s5 = scalar_select 0, %s4, %s2
  $region1: #{tpu_custom_call.1} parent=0
    #allocation2 [shape = 'u8[45056]{0}', space=vmem, size = 0xb000, scoped, tag = 'input window, operand 0, single buffered']
    #allocation3 [shape = 's32[1]{0}', space=sflag, size = 0x4, scoped, tag = 'scoped memory for tpu_custom_call.1']
    #allocation4 [shape = 's32[1]{0}', space=sflag, size = 0x4, scoped, tag = 'scoped memory for tpu_custom_call.1']
    #allocation5 [shape = 'u8[512]{0}', space=smem, size = 0x200, scoped, tag = 'output window, operand 0, single buffered']
    %6 = vsyncpa [#allocation3], 0
    %7 = vsyncpa [#allocation4], 0
    // Predicated region
    $region2: #{tpu_custom_call.1} parent=1 // pred_check
      _
    $region3: #{tpu_custom_call.1} parent=1 // pred_check_branch
      %9 = sbr.rel (0) target = $region5
    $region4: #{tpu_custom_call.1} parent=1 // pred_region
      %s11 = ssub.s32 1408, 1408
      %12 = vsyncadd [#allocation3], %s11
      %s13 = sshll.u32 [#allocation2], 4
      %s14 = int_to_ptr.vmem [resolvable:$true] %s13
      %19 = dma.hbm_to_vmem [thread:$0]  %s0, 1408, %s14, [#allocation3], 128, 128, 8
    $region5: #{tpu_custom_call.1} parent=1 // pred_fallthru
      _
    // Predicated region
    $region6: #{tpu_custom_call.1} parent=1 // pred_check
      _
    $region7: #{tpu_custom_call.1} parent=1 // pred_check_branch
      %21 = sbr.rel (0) target = $region9
    $region8: #{tpu_custom_call.1} parent=1 // pred_region
      %22 = dma.done [#allocation3], 1408
    $region9: #{tpu_custom_call.1} parent=1 // pred_fallthru
      _
    %v23 = vld [vmem:[#allocation2] sm:$0xff]
    %s24 = scalar_lea.vmem [#allocation2], 8
    %v25 = vld [vmem:[%s24] sm:$0xff]
    %s26 = scalar_lea.vmem [#allocation2], 16
    %v27 = vld [vmem:[%s26] sm:$0xff]
    %s28 = scalar_lea.vmem [#allocation2], 24
    %v29 = vld [vmem:[%s28] sm:$0xff]
    %s30 = scalar_lea.vmem [#allocation2], 32
    %v31 = vld [vmem:[%s30] sm:$0xff]
    %s32 = scalar_lea.vmem [#allocation2], 40
    %v33 = vld [vmem:[%s32] sm:$0xff]
    %s34 = scalar_lea.vmem [#allocation2], 48
    %v35 = vld [vmem:[%s34] sm:$0xff]
    %s36 = scalar_lea.vmem [#allocation2], 56
    %v37 = vld [vmem:[%s36] sm:$0xff]
    %s38 = scalar_lea.vmem [#allocation2], 64
    %v39 = vld [vmem:[%s38] sm:$0xff]
    %s40 = scalar_lea.vmem [#allocation2], 72
    %v41 = vld [vmem:[%s40] sm:$0xff]
    %s42 = scalar_lea.vmem [#allocation2], 80
    %v43 = vld [vmem:[%s42] sm:$0xff]
    %v44 = vxor.u32 %v23, 2147483648
    %v45 = vmul.f32 %v44, 1.442695
    %v46 = vpow.pop %v45
    %v47 = vadd.f32 %v46, 1.0
    %v48 = vrcp.pop %v47
    %v49 = vmul.f32 1.0, %v48
    %v50 = vxor.u32 %v25, 2147483648
    %v51 = vmul.f32 %v50, 1.442695
    %v52 = vpow.pop %v51
    %v53 = vadd.f32 %v52, 1.0
    %v54 = vrcp.pop %v53
    %v55 = vmul.f32 1.0, %v54
    %v56 = vmul.f32 %v27, 1.442695
    %v57 = vpow.pop %v56
    %v58 = vmul.f32 %v29, 1.442695
    %v59 = vpow.pop %v58
    %v60 = vxor.u32 %v31, 2147483648
    %v61 = vmul.f32 %v60, 1.442695
    %v62 = vpow.pop %v61
    %v63 = vadd.f32 %v62, 1.0
    %v64 = vrcp.pop %v63
    %v65 = vmul.f32 1.0, %v64
    %v66 = vmul.f32 %v41, 0.5
    %v67 = vadd.f32 %v37, %v66
    %v68 = vmul.f32 %v57, 0.5
    %v69 = vadd.f32 %v49, %v68
    %v70 = vmin.f32 %v67, %v69
    %v71 = vsub.f32 %v37, %v66
    %v72 = vsub.f32 %v49, %v68
    %v73 = vmax.f32 %v71, %v72
    %v74 = vsub.f32 %v70, %v73
    %v75 = vmax.f32 %v74, 0.0
    %v76 = vmul.f32 %v43, 0.5
    %v77 = vadd.f32 %v39, %v76
    %v78 = vmul.f32 %v59, 0.5
    %v79 = vadd.f32 %v55, %v78
    %v80 = vmin.f32 %v77, %v79
    %v81 = vsub.f32 %v39, %v76
    %v82 = vsub.f32 %v55, %v78
    %v83 = vmax.f32 %v81, %v82
    %v84 = vsub.f32 %v80, %v83
    %v85 = vmax.f32 %v84, 0.0
    %v86 = vmul.f32 %v75, %v85
    %v87 = vmul.f32 %v41, %v43
    %v88 = vmul.f32 %v57, %v59
    %v89 = vadd.f32 %v87, %v88
    %v90 = vsub.f32 %v89, %v86
    %vm91 = vcmp.gt.f32.partialorder %v90, 0.0
    %v92 = vsel %vm91, %v90, 1.0
    %v93 = vrcp.pop %v92
    %v94 = vmul.f32 %v86, %v93
    %v95 = vsel %vm91, %v94, 0.0
    %v96 = vsub.f32 %v49, %v37
    %v97 = vmul.f32 %v96, %v96
    %v98 = vsub.f32 %v55, %v39
    %v99 = vmul.f32 %v98, %v98
    %v100 = vadd.f32 %v97, %v99
    %v101 = vmul.f32 %v33, %v100
    %102 = vadd.xlane.f32.xlu0 %v101
    %v103 = vpop.xlane.xlu0 %102
    %v104 = vrot.slane %v103, 4
    %v105 = vadd.f32 %v103, %v104
    %v106 = vrot.slane %v105, 2
    %v107 = vadd.f32 %v105, %v106
    %v108 = vrot.slane %v107, 1
    %v109 = vadd.f32 %v107, %v108
    %s110 = vtos %v109
    %v111 = vadd.f32 %v57, 1e-06
    %v112 = vrsqrt.pop %v111
    %v113 = vmul.f32 %v111, %v112
    %vm114 = vcmp.eq.f32.partialorder %v111, inf
    %v115 = vsel %vm114, %v111, %v113
    %vm116 = vcmp.eq.f32.partialorder %v111, 0.0
    %v117 = vand.u32 %v111, 2147483648
    %v118 = vsel %vm116, %v117, %v115
    %v119 = vadd.f32 %v41, 1e-06
    %v120 = vrsqrt.pop %v119
    %v121 = vmul.f32 %v119, %v120
    %vm122 = vcmp.eq.f32.partialorder %v119, inf
    %v123 = vsel %vm122, %v119, %v121
    %vm124 = vcmp.eq.f32.partialorder %v119, 0.0
    %v125 = vand.u32 %v119, 2147483648
    %v126 = vsel %vm124, %v125, %v123
    %v127 = vsub.f32 %v118, %v126
    %v128 = vmul.f32 %v127, %v127
    %v129 = vadd.f32 %v59, 1e-06
    %v130 = vrsqrt.pop %v129
    %v131 = vmul.f32 %v129, %v130
    %vm132 = vcmp.eq.f32.partialorder %v129, inf
    %v133 = vsel %vm132, %v129, %v131
    %vm134 = vcmp.eq.f32.partialorder %v129, 0.0
    %v135 = vand.u32 %v129, 2147483648
    %v136 = vsel %vm134, %v135, %v133
    %v137 = vadd.f32 %v43, 1e-06
    %v138 = vrsqrt.pop %v137
    %v139 = vmul.f32 %v137, %v138
    %vm140 = vcmp.eq.f32.partialorder %v137, inf
    %v141 = vsel %vm140, %v137, %v139
    %vm142 = vcmp.eq.f32.partialorder %v137, 0.0
    %v143 = vand.u32 %v137, 2147483648
    %v144 = vsel %vm142, %v143, %v141
    %v145 = vsub.f32 %v136, %v144
    %v146 = vmul.f32 %v145, %v145
    %v147 = vadd.f32 %v128, %v146
    %v148 = vmul.f32 %v33, %v147
    %149 = vadd.xlane.f32.xlu0 %v148
    %v150 = vpop.xlane.xlu0 %149
    %v151 = vrot.slane %v150, 4
    %v152 = vadd.f32 %v150, %v151
    %v153 = vrot.slane %v152, 2
    %v154 = vadd.f32 %v152, %v153
    %v155 = vrot.slane %v154, 1
    %v156 = vadd.f32 %v154, %v155
    %s157 = vtos %v156
    %v158 = vsub.f32 %v95, %v65
    %v159 = vmul.f32 %v158, %v158
    %v160 = vmul.f32 %v33, %v159
    %161 = vadd.xlane.f32.xlu0 %v160
    %v162 = vpop.xlane.xlu0 %161
    %v163 = vrot.slane %v162, 4
    %v164 = vadd.f32 %v162, %v163
    %v165 = vrot.slane %v164, 2
    %v166 = vadd.f32 %v164, %v165
    %v167 = vrot.slane %v166, 1
    %v168 = vadd.f32 %v166, %v167
    %s169 = vtos %v168
    %v170 = vmul.f32 %v35, %v65
    %v171 = vmul.f32 %v170, %v65
    %172 = vadd.xlane.f32.xlu0 %v171
    %v173 = vpop.xlane.xlu0 %172
    %v174 = vrot.slane %v173, 4
    %v175 = vadd.f32 %v173, %v174
    %v176 = vrot.slane %v175, 2
    %v177 = vadd.f32 %v175, %v176
    %v178 = vrot.slane %v177, 1
    %v179 = vadd.f32 %v177, %v178
    %s180 = vtos %v179
    %s181 = scalar_lea.smem [#allocation5], 0
    %182 = sst [smem:[%s181]] %s110
    %s183 = scalar_lea.smem [#allocation5], 1
    %184 = sst [smem:[%s183]] %s157
    %s185 = scalar_lea.smem [#allocation5], 2
    %186 = sst [smem:[%s185]] %s169
    %s187 = scalar_lea.smem [#allocation5], 3
    %188 = sst [smem:[%s187]] %s180
    // Predicated region
    $region10: #{tpu_custom_call.1} parent=1 // pred_check
      _
    $region11: #{tpu_custom_call.1} parent=1 // pred_check_branch
      %190 = sbr.rel (0) target = $region13
    $region12: #{tpu_custom_call.1} parent=1 // pred_region
      %s192 = ssub.s32 16, 16
      %193 = vsyncadd [#allocation4], %s192
      %196 = dma.smem_to_hbm [#allocation5], 16, %s1, [#allocation4]
    $region13: #{tpu_custom_call.1} parent=1 // pred_fallthru
      _
    // Predicated region
    $region14: #{tpu_custom_call.1} parent=1 // pred_check
      _
    $region15: #{tpu_custom_call.1} parent=1 // pred_check_branch
      %198 = sbr.rel (0) target = $region17
    $region16: #{tpu_custom_call.1} parent=1 // pred_region
      %199 = dma.done [#allocation4], 16
    $region17: #{tpu_custom_call.1} parent=1 // pred_fallthru
      _
    %200 = sfence
    %201 = vsyncpa [#allocation3], 1
    %202 = vsyncpa [#allocation4], 1

</llo_original>
